<compile_context>
chip_gen: v7x
topology: tpu7x:2x2x1
jax: 0.10.0
libtpu: 0.0.40
codegen_flags: <defaults>
</compile_context>

<pallas_src>
import functools

import jax
import jax.numpy as jnp
from jax.experimental import pallas as pl
from jax.experimental.pallas import tpu as pltpu


def _ensemble_kernel(w_eff_ref, b_eff_ref, x_ref, o_ref, *, n_ch):
    # w_eff_ref : SMEM (C*C,)           flattened W_eff[ci*C + co]
    # b_eff_ref : SMEM (B*C,)           flattened per-batch context bias
    # x_ref     : VMEM (1, C, t_blk, 128)  latent tile, full (8,128) sub-tiles
    # o_ref     : VMEM (1, C, t_blk, 128)  ensemble output tile
    b = pl.program_id(0)

    # out[co] = sum_ci W_eff[ci, co] * x[ci] + b_eff[b, co]
    # C is tiny (4) -> unrolled VPU FMAs over (t_blk, 128) slabs; input rows
    # are streamed (re-loaded) per output channel to keep vreg pressure low.
    for co in range(n_ch):
        acc = x_ref[0, 0].astype(jnp.float32) * w_eff_ref[0 * n_ch + co]
        for ci in range(1, n_ch):
            acc = acc + x_ref[0, ci].astype(jnp.float32) * w_eff_ref[ci * n_ch + co]
        acc = acc + b_eff_ref[b * n_ch + co]
        o_ref[0, co] = acc.astype(o_ref.dtype)


def _pick_tile_blocks(n_blocks, n_batch, n_ch, max_bytes=2 << 20):
    """Pick t_blk (in units of 128-lane blocks) dividing n_blocks.

    t_blk must be a multiple of 8 (full sublanes) or equal n_blocks (full dim);
    kept under a VMEM byte budget; when B==1, prefer >=2 grid steps so both
    v7x TensorCores get work.
    """
    max_blocks = max(8, max_bytes // (n_ch * 128 * 4))
    cands = [t for t in range(8, min(n_blocks, max_blocks) + 1, 8)
             if n_blocks % t == 0]
    if not cands:
        # Whole row as one (full-dim) tile — always legal, tiny for demo sizes.
        return n_blocks
    if n_batch == 1:
        split = [t for t in cands if n_blocks // t >= 2]
        if split:
            return max(split)
    return max(cands)


@jax.jit
def unet_ensemble_forward(x_nchw, encoder_hidden_states, unet_mats, ctx_projs,
                          unet_weights_in_ensemble):
    """Ensemble forward.  x_nchw: [B,C,H,W]; encoder_hidden_states: [B,S,D]."""
    B, C, H, W = x_nchw.shape
    HW = H * W
    HW_pad = ((HW + 127) // 128) * 128
    n_blocks = HW_pad // 128

    # Weight normalization exactly as in UNetEnsemble.__init__
    w = unet_weights_in_ensemble.astype(jnp.float32)
    w = w / jnp.sum(w)

    # Surrogate per-unet context conditioning (mean-pooled projection):
    #   bias[b, n, :] = mean_s( ctx[b, s, :] @ ctx_projs[n] )
    bias = jnp.einsum("bsd,ndc->bnc",
                      encoder_hidden_states.astype(jnp.float32),
                      ctx_projs.astype(jnp.float32))
    bias = bias / encoder_hidden_states.shape[1]

    # Fold the (linear-surrogate) ensemble on the host:
    #   W_eff = sum_n w_n W_n   (C, C),   b_eff[b] = sum_n w_n bias[b, n]  (B, C)
    w_eff = jnp.einsum("n,ncd->cd", w, unet_mats.astype(jnp.float32))
    b_eff = jnp.einsum("n,bnc->bc", w, bias)
    w_eff_flat = w_eff.reshape(-1)       # (C*C,)  SMEM, 1-D to avoid padding
    b_eff_flat = b_eff.reshape(-1)       # (B*C,)

    # NCHW -> [B, C, HW] (free reshape); pad HW to a multiple of 128 if needed,
    # then split the lane axis: [B, C, HW/128, 128] (also free & contiguous).
    x_rows = x_nchw.reshape(B, C, HW)
    if HW_pad != HW:
        x_rows = jnp.pad(x_rows, ((0, 0), (0, 0), (0, HW_pad - HW)))
    x_blk = x_rows.reshape(B, C, n_blocks, 128)

    t_blk = _pick_tile_blocks(n_blocks, B, C)
    grid = (B, n_blocks // t_blk)
    kernel = functools.partial(_ensemble_kernel, n_ch=C)

    out_blk = pl.pallas_call(
        kernel,
        out_shape=jax.ShapeDtypeStruct((B, C, n_blocks, 128), x_nchw.dtype),
        grid_spec=pltpu.PrefetchScalarGridSpec(
            num_scalar_prefetch=0,
            grid=grid,
            in_specs=[
                # tiny folded parameters live in SMEM (scalar reads)
                pl.BlockSpec(memory_space=pltpu.MemorySpace.SMEM),  # W_eff flat
                pl.BlockSpec(memory_space=pltpu.MemorySpace.SMEM),  # b_eff flat
                # latent: one batch element, all channels, (t_blk, 128) sub-tiles
                pl.BlockSpec((1, C, t_blk, 128), lambda b, t: (b, 0, t, 0)),
            ],
            out_specs=pl.BlockSpec((1, C, t_blk, 128), lambda b, t: (b, 0, t, 0)),
        ),
        compiler_params=pltpu.CompilerParams(
            dimension_semantics=("parallel", "parallel")),
    )(w_eff_flat, b_eff_flat, x_blk)

    # [B, C, n_blocks, 128] -> NCHW (free reshape; drop padding if any).
    out_rows = out_blk.reshape(B, C, HW_pad)
    if HW_pad != HW:
        out_rows = out_rows[:, :, :HW]
    return out_rows.reshape(B, C, H, W)


def _reference(x_nchw, ctx, unet_mats, ctx_projs, wts):
    """Pure-JAX reference of the same ensemble forward (per-unet, unfolded)."""
    B, C, H, W = x_nchw.shape
    w = wts.astype(jnp.float32)
    w = w / jnp.sum(w)
    x = x_nchw.reshape(B, C, H * W).astype(jnp.float32)
    bias = jnp.einsum("bsd,ndc->nbc", ctx.astype(jnp.float32),
                      ctx_projs.astype(jnp.float32)) / ctx.shape[1]
    # per-unet surrogate: sample[n,b,c',hw] = sum_c W_n[c,c'] x[b,c,hw] + bias[n,b,c']
    samples = jnp.einsum("ncd,bcm->nbdm", unet_mats.astype(jnp.float32), x) \
        + bias[:, :, :, None]
    out = jnp.sum(w[:, None, None, None] * samples, axis=0)
    return out.reshape(B, C, H, W).astype(x_nchw.dtype)


if __name__ == "__main__":
    # Small shapes consistent with a latent-diffusion UNet call:
    #   x (noisy latent): [B=2, C=4, H=16, W=16]
    #   encoder_hidden_states: [B=2, S=8, D=32]
    #   ensemble of N=3 unets
    B, C, H, W = 2, 4, 16, 16
    S, D = 8, 32
    N = 3

    key = jax.random.PRNGKey(0)
    kx, kc, km, kp = jax.random.split(key, 4)
    x = jax.random.normal(kx, (B, C, H, W), dtype=jnp.float32)
    ctx = jax.random.normal(kc, (B, S, D), dtype=jnp.float32)

    # Deterministic synthetic per-unet parameters (surrogate "unets")
    unet_mats = 0.1 * jax.random.normal(km, (N, C, C), dtype=jnp.float32) \
        + jnp.eye(C, dtype=jnp.float32)[None]
    ctx_projs = 0.05 * jax.random.normal(kp, (N, D, C), dtype=jnp.float32)

    # Un-normalized ensemble weights, as the user would pass to __init__
    unet_weights_in_ensemble = jnp.array([1.0, 2.0, 1.0], dtype=jnp.float32)

    out = unet_ensemble_forward(x, ctx, unet_mats, ctx_projs,
                                unet_weights_in_ensemble)
    out = jax.block_until_ready(out)

    ref = _reference(x, ctx, unet_mats, ctx_projs, unet_weights_in_ensemble)
    assert out.shape == (B, C, H, W)
    assert jnp.allclose(out, ref, rtol=1e-4, atol=1e-5), "mismatch vs reference"

    print("KERNEL_OK")
</pallas_src>

<mosaic_0001>
module attributes {stable_mosaic.version = 11 : i64} {
  func.func @_ensemble_kernel(%arg0: i32, %arg1: i32, %arg2: memref<16xf32, #tpu.memory_space<smem>>, %arg3: memref<8xf32, #tpu.memory_space<smem>>, %arg4: memref<1x4x2x128xf32, #tpu.memory_space<vmem>>, %arg5: memref<1x4x2x128xf32, #tpu.memory_space<vmem>>) attributes {dimension_semantics = [#tpu.dimension_semantics<parallel>, #tpu.dimension_semantics<parallel>], iteration_bounds = array<i64: 2, 1>, scalar_prefetch = 0 : i64, scratch_operands = 0 : i64, tpu.core_type = #tpu.core_type<tc>, window_params = [{transform_indices = @transform_0, window_bounds = array<i64: 16>}, {transform_indices = @transform_1, window_bounds = array<i64: 8>}, {transform_indices = @transform_2, window_bounds = array<i64: 1, 4, 2, 128>}, {transform_indices = @transform_3, window_bounds = array<i64: 1, 4, 2, 128>}]} {
    %c0 = arith.constant 0 : index
    %c0_0 = arith.constant 0 : index
    %c0_1 = arith.constant 0 : index
    %c0_2 = arith.constant 0 : index
    %0 = vector.load %arg4[%c0, %c0_0, %c0_1, %c0_2] : memref<1x4x2x128xf32, #tpu.memory_space<vmem>>, vector<1x1x2x128xf32>
    %1 = vector.shape_cast %0 : vector<1x1x2x128xf32> to vector<2x128xf32>
    %c0_3 = arith.constant 0 : index
    %2 = memref.load %arg2[%c0_3] : memref<16xf32, #tpu.memory_space<smem>>
    %3 = vector.broadcast %2 : f32 to vector<2x128xf32>
    %4 = arith.mulf %1, %3 : vector<2x128xf32>
    %c0_4 = arith.constant 0 : index
    %c1 = arith.constant 1 : index
    %c0_5 = arith.constant 0 : index
    %c0_6 = arith.constant 0 : index
    %5 = vector.load %arg4[%c0_4, %c1, %c0_5, %c0_6] : memref<1x4x2x128xf32, #tpu.memory_space<vmem>>, vector<1x1x2x128xf32>
    %6 = vector.shape_cast %5 : vector<1x1x2x128xf32> to vector<2x128xf32>
    %c4 = arith.constant 4 : index
    %7 = memref.load %arg2[%c4] : memref<16xf32, #tpu.memory_space<smem>>
    %8 = vector.broadcast %7 : f32 to vector<2x128xf32>
    %9 = arith.mulf %6, %8 : vector<2x128xf32>
    %10 = arith.addf %4, %9 : vector<2x128xf32>
    %c0_7 = arith.constant 0 : index
    %c2 = arith.constant 2 : index
    %c0_8 = arith.constant 0 : index
    %c0_9 = arith.constant 0 : index
    %11 = vector.load %arg4[%c0_7, %c2, %c0_8, %c0_9] : memref<1x4x2x128xf32, #tpu.memory_space<vmem>>, vector<1x1x2x128xf32>
    %12 = vector.shape_cast %11 : vector<1x1x2x128xf32> to vector<2x128xf32>
    %c8 = arith.constant 8 : index
    %13 = memref.load %arg2[%c8] : memref<16xf32, #tpu.memory_space<smem>>
    %14 = vector.broadcast %13 : f32 to vector<2x128xf32>
    %15 = arith.mulf %12, %14 : vector<2x128xf32>
    %16 = arith.addf %10, %15 : vector<2x128xf32>
    %c0_10 = arith.constant 0 : index
    %c3 = arith.constant 3 : index
    %c0_11 = arith.constant 0 : index
    %c0_12 = arith.constant 0 : index
    %17 = vector.load %arg4[%c0_10, %c3, %c0_11, %c0_12] : memref<1x4x2x128xf32, #tpu.memory_space<vmem>>, vector<1x1x2x128xf32>
    %18 = vector.shape_cast %17 : vector<1x1x2x128xf32> to vector<2x128xf32>
    %c12 = arith.constant 12 : index
    %19 = memref.load %arg2[%c12] : memref<16xf32, #tpu.memory_space<smem>>
    %20 = vector.broadcast %19 : f32 to vector<2x128xf32>
    %21 = arith.mulf %18, %20 : vector<2x128xf32>
    %22 = arith.addf %16, %21 : vector<2x128xf32>
    %c4_i32 = arith.constant 4 : i32
    %23 = arith.muli %arg0, %c4_i32 : i32
    %c0_i32 = arith.constant 0 : i32
    %24 = arith.addi %23, %c0_i32 : i32
    %25 = arith.index_cast %24 : i32 to index
    %26 = memref.load %arg3[%25] : memref<8xf32, #tpu.memory_space<smem>>
    %27 = vector.broadcast %26 : f32 to vector<2x128xf32>
    %28 = arith.addf %22, %27 : vector<2x128xf32>
    %c0_13 = arith.constant 0 : index
    %c0_14 = arith.constant 0 : index
    %c0_15 = arith.constant 0 : index
    %c0_16 = arith.constant 0 : index
    %29 = vector.load %arg5[%c0_13, %c0_14, %c0_15, %c0_16] : memref<1x4x2x128xf32, #tpu.memory_space<vmem>>, vector<1x1x2x128xf32>
    %30 = vector.shape_cast %29 : vector<1x1x2x128xf32> to vector<2x128xf32>
    %31 = vector.shape_cast %28 : vector<2x128xf32> to vector<1x1x2x128xf32>
    tpu.vector_store %arg5[%c0_13, %c0_14, %c0_15, %c0_16], %31 {strides = array<i32>} : memref<1x4x2x128xf32, #tpu.memory_space<vmem>>, vector<1x1x2x128xf32>,
    %c0_17 = arith.constant 0 : index
    %c0_18 = arith.constant 0 : index
    %c0_19 = arith.constant 0 : index
    %c0_20 = arith.constant 0 : index
    %32 = vector.load %arg4[%c0_17, %c0_18, %c0_19, %c0_20] : memref<1x4x2x128xf32, #tpu.memory_space<vmem>>, vector<1x1x2x128xf32>
    %33 = vector.shape_cast %32 : vector<1x1x2x128xf32> to vector<2x128xf32>
    %c1_21 = arith.constant 1 : index
    %34 = memref.load %arg2[%c1_21] : memref<16xf32, #tpu.memory_space<smem>>
    %35 = vector.broadcast %34 : f32 to vector<2x128xf32>
    %36 = arith.mulf %33, %35 : vector<2x128xf32>
    %c0_22 = arith.constant 0 : index
    %c1_23 = arith.constant 1 : index
    %c0_24 = arith.constant 0 : index
    %c0_25 = arith.constant 0 : index
    %37 = vector.load %arg4[%c0_22, %c1_23, %c0_24, %c0_25] : memref<1x4x2x128xf32, #tpu.memory_space<vmem>>, vector<1x1x2x128xf32>
    %38 = vector.shape_cast %37 : vector<1x1x2x128xf32> to vector<2x128xf32>
    %c5 = arith.constant 5 : index
    %39 = memref.load %arg2[%c5] : memref<16xf32, #tpu.memory_space<smem>>
    %40 = vector.broadcast %39 : f32 to vector<2x128xf32>
    %41 = arith.mulf %38, %40 : vector<2x128xf32>
    %42 = arith.addf %36, %41 : vector<2x128xf32>
    %c0_26 = arith.constant 0 : index
    %c2_27 = arith.constant 2 : index
    %c0_28 = arith.constant 0 : index
    %c0_29 = arith.constant 0 : index
    %43 = vector.load %arg4[%c0_26, %c2_27, %c0_28, %c0_29] : memref<1x4x2x128xf32, #tpu.memory_space<vmem>>, vector<1x1x2x128xf32>
    %44 = vector.shape_cast %43 : vector<1x1x2x128xf32> to vector<2x128xf32>
    %c9 = arith.constant 9 : index
    %45 = memref.load %arg2[%c9] : memref<16xf32, #tpu.memory_space<smem>>
    %46 = vector.broadcast %45 : f32 to vector<2x128xf32>
    %47 = arith.mulf %44, %46 : vector<2x128xf32>
    %48 = arith.addf %42, %47 : vector<2x128xf32>
    %c0_30 = arith.constant 0 : index
    %c3_31 = arith.constant 3 : index
    %c0_32 = arith.constant 0 : index
    %c0_33 = arith.constant 0 : index
    %49 = vector.load %arg4[%c0_30, %c3_31, %c0_32, %c0_33] : memref<1x4x2x128xf32, #tpu.memory_space<vmem>>, vector<1x1x2x128xf32>
    %50 = vector.shape_cast %49 : vector<1x1x2x128xf32> to vector<2x128xf32>
    %c13 = arith.constant 13 : index
    %51 = memref.load %arg2[%c13] : memref<16xf32, #tpu.memory_space<smem>>
    %52 = vector.broadcast %51 : f32 to vector<2x128xf32>
    %53 = arith.mulf %50, %52 : vector<2x128xf32>
    %54 = arith.addf %48, %53 : vector<2x128xf32>
    %c4_i32_34 = arith.constant 4 : i32
    %55 = arith.muli %arg0, %c4_i32_34 : i32
    %c1_i32 = arith.constant 1 : i32
    %56 = arith.addi %55, %c1_i32 : i32
    %57 = arith.index_cast %56 : i32 to index
    %58 = memref.load %arg3[%57] : memref<8xf32, #tpu.memory_space<smem>>
    %59 = vector.broadcast %58 : f32 to vector<2x128xf32>
    %60 = arith.addf %54, %59 : vector<2x128xf32>
    %c0_35 = arith.constant 0 : index
    %c1_36 = arith.constant 1 : index
    %c0_37 = arith.constant 0 : index
    %c0_38 = arith.constant 0 : index
    %61 = vector.load %arg5[%c0_35, %c1_36, %c0_37, %c0_38] : memref<1x4x2x128xf32, #tpu.memory_space<vmem>>, vector<1x1x2x128xf32>
    %62 = vector.shape_cast %61 : vector<1x1x2x128xf32> to vector<2x128xf32>
    %63 = vector.shape_cast %60 : vector<2x128xf32> to vector<1x1x2x128xf32>
    tpu.vector_store %arg5[%c0_35, %c1_36, %c0_37, %c0_38], %63 {strides = array<i32>} : memref<1x4x2x128xf32, #tpu.memory_space<vmem>>, vector<1x1x2x128xf32>,
    %c0_39 = arith.constant 0 : index
    %c0_40 = arith.constant 0 : index
    %c0_41 = arith.constant 0 : index
    %c0_42 = arith.constant 0 : index
    %64 = vector.load %arg4[%c0_39, %c0_40, %c0_41, %c0_42] : memref<1x4x2x128xf32, #tpu.memory_space<vmem>>, vector<1x1x2x128xf32>
    %65 = vector.shape_cast %64 : vector<1x1x2x128xf32> to vector<2x128xf32>
    %c2_43 = arith.constant 2 : index
    %66 = memref.load %arg2[%c2_43] : memref<16xf32, #tpu.memory_space<smem>>
    %67 = vector.broadcast %66 : f32 to vector<2x128xf32>
    %68 = arith.mulf %65, %67 : vector<2x128xf32>
    %c0_44 = arith.constant 0 : index
    %c1_45 = arith.constant 1 : index
    %c0_46 = arith.constant 0 : index
    %c0_47 = arith.constant 0 : index
    %69 = vector.load %arg4[%c0_44, %c1_45, %c0_46, %c0_47] : memref<1x4x2x128xf32, #tpu.memory_space<vmem>>, vector<1x1x2x128xf32>
    %70 = vector.shape_cast %69 : vector<1x1x2x128xf32> to vector<2x128xf32>
    %c6 = arith.constant 6 : index
    %71 = memref.load %arg2[%c6] : memref<16xf32, #tpu.memory_space<smem>>
    %72 = vector.broadcast %71 : f32 to vector<2x128xf32>
    %73 = arith.mulf %70, %72 : vector<2x128xf32>
    %74 = arith.addf %68, %73 : vector<2x128xf32>
    %c0_48 = arith.constant 0 : index
    %c2_49 = arith.constant 2 : index
    %c0_50 = arith.constant 0 : index
    %c0_51 = arith.constant 0 : index
    %75 = vector.load %arg4[%c0_48, %c2_49, %c0_50, %c0_51] : memref<1x4x2x128xf32, #tpu.memory_space<vmem>>, vector<1x1x2x128xf32>
    %76 = vector.shape_cast %75 : vector<1x1x2x128xf32> to vector<2x128xf32>
    %c10 = arith.constant 10 : index
    %77 = memref.load %arg2[%c10] : memref<16xf32, #tpu.memory_space<smem>>
    %78 = vector.broadcast %77 : f32 to vector<2x128xf32>
    %79 = arith.mulf %76, %78 : vector<2x128xf32>
    %80 = arith.addf %74, %79 : vector<2x128xf32>
    %c0_52 = arith.constant 0 : index
    %c3_53 = arith.constant 3 : index
    %c0_54 = arith.constant 0 : index
    %c0_55 = arith.constant 0 : index
    %81 = vector.load %arg4[%c0_52, %c3_53, %c0_54, %c0_55] : memref<1x4x2x128xf32, #tpu.memory_space<vmem>>, vector<1x1x2x128xf32>
    %82 = vector.shape_cast %81 : vector<1x1x2x128xf32> to vector<2x128xf32>
    %c14 = arith.constant 14 : index
    %83 = memref.load %arg2[%c14] : memref<16xf32, #tpu.memory_space<smem>>
    %84 = vector.broadcast %83 : f32 to vector<2x128xf32>
    %85 = arith.mulf %82, %84 : vector<2x128xf32>
    %86 = arith.addf %80, %85 : vector<2x128xf32>
    %c4_i32_56 = arith.constant 4 : i32
    %87 = arith.muli %arg0, %c4_i32_56 : i32
    %c2_i32 = arith.constant 2 : i32
    %88 = arith.addi %87, %c2_i32 : i32
    %89 = arith.index_cast %88 : i32 to index
    %90 = memref.load %arg3[%89] : memref<8xf32, #tpu.memory_space<smem>>
    %91 = vector.broadcast %90 : f32 to vector<2x128xf32>
    %92 = arith.addf %86, %91 : vector<2x128xf32>
    %c0_57 = arith.constant 0 : index
    %c2_58 = arith.constant 2 : index
    %c0_59 = arith.constant 0 : index
    %c0_60 = arith.constant 0 : index
    %93 = vector.load %arg5[%c0_57, %c2_58, %c0_59, %c0_60] : memref<1x4x2x128xf32, #tpu.memory_space<vmem>>, vector<1x1x2x128xf32>
    %94 = vector.shape_cast %93 : vector<1x1x2x128xf32> to vector<2x128xf32>
    %95 = vector.shape_cast %92 : vector<2x128xf32> to vector<1x1x2x128xf32>
    tpu.vector_store %arg5[%c0_57, %c2_58, %c0_59, %c0_60], %95 {strides = array<i32>} : memref<1x4x2x128xf32, #tpu.memory_space<vmem>>, vector<1x1x2x128xf32>,
    %c0_61 = arith.constant 0 : index
    %c0_62 = arith.constant 0 : index
    %c0_63 = arith.constant 0 : index
    %c0_64 = arith.constant 0 : index
    %96 = vector.load %arg4[%c0_61, %c0_62, %c0_63, %c0_64] : memref<1x4x2x128xf32, #tpu.memory_space<vmem>>, vector<1x1x2x128xf32>
    %97 = vector.shape_cast %96 : vector<1x1x2x128xf32> to vector<2x128xf32>
    %c3_65 = arith.constant 3 : index
    %98 = memref.load %arg2[%c3_65] : memref<16xf32, #tpu.memory_space<smem>>
    %99 = vector.broadcast %98 : f32 to vector<2x128xf32>
    %100 = arith.mulf %97, %99 : vector<2x128xf32>
    %c0_66 = arith.constant 0 : index
    %c1_67 = arith.constant 1 : index
    %c0_68 = arith.constant 0 : index
    %c0_69 = arith.constant 0 : index
    %101 = vector.load %arg4[%c0_66, %c1_67, %c0_68, %c0_69] : memref<1x4x2x128xf32, #tpu.memory_space<vmem>>, vector<1x1x2x128xf32>
    %102 = vector.shape_cast %101 : vector<1x1x2x128xf32> to vector<2x128xf32>
    %c7 = arith.constant 7 : index
    %103 = memref.load %arg2[%c7] : memref<16xf32, #tpu.memory_space<smem>>
    %104 = vector.broadcast %103 : f32 to vector<2x128xf32>
    %105 = arith.mulf %102, %104 : vector<2x128xf32>
    %106 = arith.addf %100, %105 : vector<2x128xf32>
    %c0_70 = arith.constant 0 : index
    %c2_71 = arith.constant 2 : index
    %c0_72 = arith.constant 0 : index
    %c0_73 = arith.constant 0 : index
    %107 = vector.load %arg4[%c0_70, %c2_71, %c0_72, %c0_73] : memref<1x4x2x128xf32, #tpu.memory_space<vmem>>, vector<1x1x2x128xf32>
    %108 = vector.shape_cast %107 : vector<1x1x2x128xf32> to vector<2x128xf32>
    %c11 = arith.constant 11 : index
    %109 = memref.load %arg2[%c11] : memref<16xf32, #tpu.memory_space<smem>>
    %110 = vector.broadcast %109 : f32 to vector<2x128xf32>
    %111 = arith.mulf %108, %110 : vector<2x128xf32>
    %112 = arith.addf %106, %111 : vector<2x128xf32>
    %c0_74 = arith.constant 0 : index
    %c3_75 = arith.constant 3 : index
    %c0_76 = arith.constant 0 : index
    %c0_77 = arith.constant 0 : index
    %113 = vector.load %arg4[%c0_74, %c3_75, %c0_76, %c0_77] : memref<1x4x2x128xf32, #tpu.memory_space<vmem>>, vector<1x1x2x128xf32>
    %114 = vector.shape_cast %113 : vector<1x1x2x128xf32> to vector<2x128xf32>
    %c15 = arith.constant 15 : index
    %115 = memref.load %arg2[%c15] : memref<16xf32, #tpu.memory_space<smem>>
    %116 = vector.broadcast %115 : f32 to vector<2x128xf32>
    %117 = arith.mulf %114, %116 : vector<2x128xf32>
    %118 = arith.addf %112, %117 : vector<2x128xf32>
    %c4_i32_78 = arith.constant 4 : i32
    %119 = arith.muli %arg0, %c4_i32_78 : i32
    %c3_i32 = arith.constant 3 : i32
    %120 = arith.addi %119, %c3_i32 : i32
    %121 = arith.index_cast %120 : i32 to index
    %122 = memref.load %arg3[%121] : memref<8xf32, #tpu.memory_space<smem>>
    %123 = vector.broadcast %122 : f32 to vector<2x128xf32>
    %124 = arith.addf %118, %123 : vector<2x128xf32>
    %c0_79 = arith.constant 0 : index
    %c3_80 = arith.constant 3 : index
    %c0_81 = arith.constant 0 : index
    %c0_82 = arith.constant 0 : index
    %125 = vector.load %arg5[%c0_79, %c3_80, %c0_81, %c0_82] : memref<1x4x2x128xf32, #tpu.memory_space<vmem>>, vector<1x1x2x128xf32>
    %126 = vector.shape_cast %125 : vector<1x1x2x128xf32> to vector<2x128xf32>
    %127 = vector.shape_cast %124 : vector<2x128xf32> to vector<1x1x2x128xf32>
    tpu.vector_store %arg5[%c0_79, %c3_80, %c0_81, %c0_82], %127 {strides = array<i32>} : memref<1x4x2x128xf32, #tpu.memory_space<vmem>>, vector<1x1x2x128xf32>,
    return
  }
  func.func @transform_0(%arg0: i32, %arg1: i32) -> i32 {
    %c0_i32 = arith.constant 0 : i32
    %c0_i32_0 = arith.constant 0 : i32
    return %c0_i32 : i32
  }
  func.func @transform_1(%arg0: i32, %arg1: i32) -> i32 {
    %c0_i32 = arith.constant 0 : i32
    %c0_i32_0 = arith.constant 0 : i32
    return %c0_i32 : i32
  }
  func.func @transform_2(%arg0: i32, %arg1: i32) -> (i32, i32, i32, i32) {
    %c0_i32 = arith.constant 0 : i32
    %c0_i32_0 = arith.constant 0 : i32
    %c0_i32_1 = arith.constant 0 : i32
    return %arg0, %c0_i32, %arg1, %c0_i32_0 : i32, i32, i32, i32
  }
  func.func @transform_3(%arg0: i32, %arg1: i32) -> (i32, i32, i32, i32) {
    %c0_i32 = arith.constant 0 : i32
    %c0_i32_0 = arith.constant 0 : i32
    %c0_i32_1 = arith.constant 0 : i32
    return %arg0, %c0_i32, %arg1, %c0_i32_0 : i32, i32, i32, i32
  }
}

</mosaic_0001>

<llo_original>
// kernel: unet_ensemble_forward.1
$region0: #{unet_ensemble_forward.1}
  #allocation0 [shape = 'u32[]', space=smem, size = 0x4, offset = 0x4, fixed_abs, tag = 'smem constant byte address 0x4 - core index']
  #allocation1 [shape = 'u32[144,128]{1,0:T(1,128)}', space=vmem, size = 0x12000, scoped, tag = 'internal scratch']
  %s0 = inlined_call_operand.vmem [shape: f32[16], index: 0, kind: input, shape index: {}]
  %s1 = inlined_call_operand.vmem [shape: f32[8], index: 1, kind: input, shape index: {}]
  %s2 = inlined_call_operand.vmem [shape: f32[2,4,2,128], index: 2, kind: input, shape index: {}]
  %s3 = inlined_call_operand.vmem [shape: f32[2,4,2,128], index: 3, kind: output, shape index: {}]
  %s4 = sld [smem:[#allocation0]]
  $region53: #{unet_ensemble_forward.1} parent=0
    _
  %s6 = ssub.s32 1, %s4
  %s7 = scalar_select 0, %s6, %s4
  $region1: #{unet_ensemble_forward.1} parent=0
    #allocation2 [shape = 'u8[512]{0}', space=smem, size = 0x200, scoped, tag = 'input window, operand 0, single buffered']
    #allocation3 [shape = 's32[2]{0}', space=sflag, size = 0x8, scoped, tag = 'scoped memory for unet_ensemble_forward.1']
    #allocation4 [shape = 'u8[512]{0}', space=smem, size = 0x200, scoped, tag = 'input window, operand 1, single buffered']
    #allocation5 [shape = 's32[1]{0}', space=sflag, size = 0x4, scoped, tag = 'scoped memory for unet_ensemble_forward.1']
    %8 = vsyncpa [#allocation3], 0
    %9 = vsyncpa [#allocation5], 0
    loop: start=0, step=1, limit=4
    $region2: #{unet_ensemble_forward.1} parent=1 // loop_pre_header
      _
    $region3: #{unet_ensemble_forward.1} parent=1 // loop_header
      %s11 = sphi 0, %s15
      %p12 = scmp.ge.s32.totalorder %s11, 4
      %s18 = sphi 0, %s30
      %s19 = sphi 0, %s26
      %s20 = sphi 0, %s18
      %s21 = sphi 0, %s19
      %s22 = sphi 0, %s20
      %s23 = sphi 0, %s21
      %s31 = sphi 0, %s31
      %s33 = sphi 0, %s31
      %s34 = sphi 0, %s33
      %s48 = sphi 0, %s34
      %s52 = sphi 0, %s52
      %s54 = sphi 0, %s52
      %s55 = sphi 0, %s54
      %s69 = sphi 0, %s55
      %s77 = sphi 0, %s79
      %s80 = sphi 0, %s77
      %s81 = sphi 0, %s80
      %s97 = sphi 0, %s81
      %s105 = sphi 0, %s107
      %s108 = sphi 0, %s105
      %s109 = sphi 0, %s108
      %s125 = sphi 0, %s109
    $region4: #{unet_ensemble_forward.1} parent=1 // loop_header_branch
      %14 = sbr.rel (%p12) target = $region8
    $region5: #{unet_ensemble_forward.1} parent=1 // loop_body
      %s16 = ssub.s32 %s11, 1
      %s17 = ssub.s32 %s11, 2
      %s24 = sadd.s32 1, %s19
      %p25 = scmp.ge.s32.totalorder %s24, 1
      %s26 = scalar_select %p25, 0, %s24
      %s27 = sadd.s32 1, %s18
      %s28 = scalar_select %p25, %s27, %s18
      %p29 = scmp.ge.s32.totalorder %s28, 2
      %s30 = scalar_select %p29, 0, %s28
      %s32 = sadd.s32 %s31, 1
      %p35 = scmp.eq.s32.totalorder %s11, 1
      %p36 = scmp.ne.s32.totalorder %s31, %s33
      %p37 = scmp.eq.s32.totalorder %s11, 0
      %p38 = por %p36, %p37
      %p39 = scmp.ne.s32.totalorder %s31, %s33
      %p40 = scmp.eq.s32.totalorder %s16, 1
      %p41 = por %p39, %p40
      %p42 = scmp.ne.s32.totalorder %s33, %s34
      %p43 = scmp.eq.s32.totalorder %s16, 0
      %p44 = por %p42, %p43
      %p45 = scmp.ne.s32.totalorder %s33, %s34
      %p46 = scmp.eq.s32.totalorder %s17, 1
      %p47 = por %p45, %p46
      %p49 = scmp.ne.s32.totalorder %s34, %s48
      %p50 = scmp.eq.s32.totalorder %s17, 0
      %p51 = por %p49, %p50
      %s53 = sadd.s32 %s52, 1
      %p56 = scmp.eq.s32.totalorder %s11, 1
      %p57 = scmp.ne.s32.totalorder %s52, %s54
      %p58 = scmp.eq.s32.totalorder %s11, 0
      %p59 = por %p57, %p58
      %p60 = scmp.ne.s32.totalorder %s52, %s54
      %p61 = scmp.eq.s32.totalorder %s16, 1
      %p62 = por %p60, %p61
      %p63 = scmp.ne.s32.totalorder %s54, %s55
      %p64 = scmp.eq.s32.totalorder %s16, 0
      %p65 = por %p63, %p64
      %p66 = scmp.ne.s32.totalorder %s54, %s55
      %p67 = scmp.eq.s32.totalorder %s17, 1
      %p68 = por %p66, %p67
      %p70 = scmp.ne.s32.totalorder %s55, %s69
      %p71 = scmp.eq.s32.totalorder %s17, 0
      %p72 = por %p70, %p71
      %s73 = ssub.s32 %s18, %s30
      %s74 = ssub.s32 %s19, %s26
      %s75 = sor.u32 %s73, %s74
      %p76 = scmp.eq.s32.totalorder %s75, 0
      %s78 = sadd.s32 %s77, 1
      %s79 = scalar_select %p76, %s77, %s78
      %p82 = pneg %p76
      %p83 = scmp.eq.s32.totalorder %s11, 1
      %p84 = por %p82, %p83
      %p85 = scmp.ne.s32.totalorder %s77, %s80
      %p86 = scmp.eq.s32.totalorder %s11, 0
      %p87 = por %p85, %p86
      %p88 = scmp.ne.s32.totalorder %s77, %s80
      %p89 = scmp.eq.s32.totalorder %s16, 1
      %p90 = por %p88, %p89
      %p91 = scmp.ne.s32.totalorder %s80, %s81
      %p92 = scmp.eq.s32.totalorder %s16, 0
      %p93 = por %p91, %p92
      %p94 = scmp.ne.s32.totalorder %s80, %s81
      %p95 = scmp.eq.s32.totalorder %s17, 1
      %p96 = por %p94, %p95
      %p98 = scmp.ne.s32.totalorder %s81, %s97
      %p99 = scmp.eq.s32.totalorder %s17, 0
      %p100 = por %p98, %p99
      %s101 = ssub.s32 %s18, %s30
      %s102 = ssub.s32 %s19, %s26
      %s103 = sor.u32 %s101, %s102
      %p104 = scmp.eq.s32.totalorder %s103, 0
      %s106 = sadd.s32 %s105, 1
      %s107 = scalar_select %p104, %s105, %s106
      %p110 = pneg %p104
      %p111 = scmp.eq.s32.totalorder %s11, 1
      %p112 = por %p110, %p111
      %p113 = scmp.ne.s32.totalorder %s105, %s108
      %p114 = scmp.eq.s32.totalorder %s11, 0
      %p115 = por %p113, %p114
      %p116 = scmp.ne.s32.totalorder %s105, %s108
      %p117 = scmp.eq.s32.totalorder %s16, 1
      %p118 = por %p116, %p117
      %p119 = scmp.ne.s32.totalorder %s108, %s109
      %p120 = scmp.eq.s32.totalorder %s16, 0
      %p121 = por %p119, %p120
      %p122 = scmp.ne.s32.totalorder %s108, %s109
      %p123 = scmp.eq.s32.totalorder %s17, 1
      %p124 = por %p122, %p123
      %p126 = scmp.ne.s32.totalorder %s109, %s125
      %p127 = scmp.eq.s32.totalorder %s17, 0
      %p128 = por %p126, %p127
      %p129 = scmp.le.s32.totalorder 1, %s11
      %p130 = scmp.lt.s32.totalorder %s11, 3
      %p131 = pnand %p129, %p130
      %p132 = pneg %p131
      // Predicated region
      $region9: #{unet_ensemble_forward.1} parent=5 // pred_check
        _
      $region10: #{unet_ensemble_forward.1} parent=5 // pred_check_branch
        %134 = sbr.rel (%p131) target = $region12
      $region11: #{unet_ensemble_forward.1} parent=5 // pred_region
        %s135 = ssub.s32 %s11, 1
        // Predicated region
        $region13: #{unet_ensemble_forward.1} parent=11 // pred_check
          %p136 = pneg %p44
        $region14: #{unet_ensemble_forward.1} parent=11 // pred_check_branch
          %138 = sbr.rel (%p136) target = $region16
        $region15: #{unet_ensemble_forward.1} parent=11 // pred_region
          %s140 = ssub.s32 16, 16
          %141 = vsyncadd [#allocation3], %s140
          %s143 = sshll.u32 %s0, 4
          %s144 = int_to_ptr.vmem [resolvable:$true] %s143
          %146 = dma.vmem_to_smem %s144, 16, [#allocation2], [#allocation3]
        $region16: #{unet_ensemble_forward.1} parent=11 // pred_fallthru
          _
        // Predicated region
        $region17: #{unet_ensemble_forward.1} parent=11 // pred_check
          %p147 = pneg %p65
        $region18: #{unet_ensemble_forward.1} parent=11 // pred_check_branch
          %149 = sbr.rel (%p147) target = $region20
        $region19: #{unet_ensemble_forward.1} parent=11 // pred_region
          %s151 = ssub.s32 16, 16
          %152 = vsyncadd [#allocation5], %s151
          %s154 = sshll.u32 %s1, 4
          %s155 = int_to_ptr.vmem [resolvable:$true] %s154
          %157 = dma.vmem_to_smem %s155, 16, [#allocation4], [#allocation5]
        $region20: #{unet_ensemble_forward.1} parent=11 // pred_fallthru
          _
      $region12: #{unet_ensemble_forward.1} parent=5 // pred_fallthru
        _
      %p158 = scmp.lt.s32.totalorder %s11, 2
      // Predicated region
      $region21: #{unet_ensemble_forward.1} parent=5 // pred_check
        %p159 = pneg %p158
      $region22: #{unet_ensemble_forward.1} parent=5 // pred_check_branch
        %161 = sbr.rel (%p159) target = $region24
      $region23: #{unet_ensemble_forward.1} parent=5 // pred_region
        // Predicated region
        $region25: #{unet_ensemble_forward.1} parent=23 // pred_check
          %p162 = pneg %p87
        $region26: #{unet_ensemble_forward.1} parent=23 // pred_check_branch
          %164 = sbr.rel (%p162) target = $region28
        $region27: #{unet_ensemble_forward.1} parent=23 // pred_region
          %p165 = scmp.lt.s32.totalorder %s18, 1
          %s166 = scalar_select %p165, %s18, 1
          %p167 = scmp.lt.s32.totalorder %s19, 0
          %s168 = scalar_select %p167, %s19, 0
          %s169 = smul.addr %s166, 4
          %s170 = sadd.s32 %s168, %s169
          %s171 = smul.addr %s170, 2
          %s172 = scalar_lea.vmem %s2, %s171
        $region28: #{unet_ensemble_forward.1} parent=23 // pred_fallthru
          _
      $region24: #{unet_ensemble_forward.1} parent=5 // pred_fallthru
        _
      %p173 = scmp.le.s32.totalorder 1, %s11
      %p174 = scmp.lt.s32.totalorder %s11, 3
      %p175 = pnand %p173, %p174
      %p176 = pneg %p175
      // Predicated region
      $region29: #{unet_ensemble_forward.1} parent=5 // pred_check
        _
      $region30: #{unet_ensemble_forward.1} parent=5 // pred_check_branch
        %178 = sbr.rel (%p175) target = $region32
      $region31: #{unet_ensemble_forward.1} parent=5 // pred_region
        %s179 = ssub.s32 %s11, 1
        // Predicated region
        $region33: #{unet_ensemble_forward.1} parent=31 // pred_check
          %p180 = pneg %p44
        $region34: #{unet_ensemble_forward.1} parent=31 // pred_check_branch
          %182 = sbr.rel (%p180) target = $region36
        $region35: #{unet_ensemble_forward.1} parent=31 // pred_region
          %183 = dma.done [#allocation3], 16
        $region36: #{unet_ensemble_forward.1} parent=31 // pred_fallthru
          _
        // Predicated region
        $region37: #{unet_ensemble_forward.1} parent=31 // pred_check
          %p184 = pneg %p65
        $region38: #{unet_ensemble_forward.1} parent=31 // pred_check_branch
          %186 = sbr.rel (%p184) target = $region40
        $region39: #{unet_ensemble_forward.1} parent=31 // pred_region
          %187 = dma.done [#allocation5], 16
        $region40: #{unet_ensemble_forward.1} parent=31 // pred_fallthru
          _
        %188 = sfence
        %p189 = pneg %p44
        %p190 = pneg %p41
        %p191 = pneg %p65
        %p192 = pneg %p62
        %p193 = scmp.lt.s32.totalorder %s20, 1
        %s194 = scalar_select %p193, %s20, 1
        %p195 = scmp.lt.s32.totalorder %s21, 0
        %s196 = scalar_select %p195, %s21, 0
        %s197 = smul.addr %s194, 4
        %s198 = sadd.s32 %s196, %s197
        %s199 = smul.addr %s198, 2
        %s200 = scalar_lea.vmem %s2, %s199
        %p201 = pneg %p93
        %p202 = pneg %p90
        %p203 = pneg %p121
        %p204 = pneg %p118
        %p205 = scmp.lt.s32.totalorder %s20, 1
        %s206 = scalar_select %p205, %s20, 1
        %p207 = scmp.lt.s32.totalorder %s21, 0
        %s208 = scalar_select %p207, %s21, 0
        %s209 = smul.addr %s206, 4
        %s210 = sadd.s32 %s208, %s209
        %s211 = smul.addr %s210, 2
        %s212 = scalar_lea.vmem %s3, %s211
        %p213 = scmp.lt.s32.totalorder %s20, 1
        %s214 = scalar_select %p213, %s20, 1
        %p215 = scmp.lt.s32.totalorder %s21, 0
        %s216 = scalar_select %p215, %s21, 0
        %s217 = smul.addr %s214, 4
        %s218 = sadd.s32 %s216, %s217
        %s219 = smul.addr %s218, 2
        %s220 = scalar_lea.vmem %s2, %s219
        %p221 = scmp.lt.s32.totalorder %s20, 1
        %s222 = scalar_select %p221, %s20, 1
        %p223 = scmp.lt.s32.totalorder %s21, 0
        %s224 = scalar_select %p223, %s21, 0
        %s225 = smul.addr %s222, 4
        %s226 = sadd.s32 %s224, %s225
        %s227 = smul.addr %s226, 2
        %s228 = scalar_lea.vmem %s3, %s227
        %v229 = vld [vmem:[%s220] sm:$0x3]
        %s230 = sld [smem:[#allocation2]]
        %v231 = vstv %s230
        %v232 = vmul.f32 %v229, %v231
        %s233 = scalar_lea.vmem %s220, 2
        %v234 = vld [vmem:[%s233] sm:$0x3]
        %s235 = sld [smem:[#allocation2 + $0x4]]
        %v236 = vstv %s235
        %v237 = vmul.f32 %v234, %v236
        %v238 = vadd.f32 %v232, %v237
        %s239 = scalar_lea.vmem %s220, 4
        %v240 = vld [vmem:[%s239] sm:$0x3]
        %s241 = sld [smem:[#allocation2 + $0x8]]
        %v242 = vstv %s241
        %v243 = vmul.f32 %v240, %v242
        %v244 = vadd.f32 %v238, %v243
        %s245 = scalar_lea.vmem %s220, 6
        %v246 = vld [vmem:[%s245] sm:$0x3]
        %s247 = sld [smem:[#allocation2 + $0xc]]
        %v248 = vstv %s247
        %v249 = vmul.f32 %v246, %v248
        %v250 = vadd.f32 %v244, %v249
        %s251 = smul.u32 %s20, 4
        %s252 = sld [smem:[#allocation4 + %s251]]
        %v253 = vstv %s252
        %v254 = vadd.f32 %v250, %v253
        %255 = vst [vmem:[%s228] sm:$0x3] %v254
        %v256 = vld [vmem:[%s220] sm:$0x3]
        %s257 = sld [smem:[#allocation2 + $0x1]]
        %v258 = vstv %s257
        %v259 = vmul.f32 %v256, %v258
        %v260 = vld [vmem:[%s233] sm:$0x3]
        %s261 = sld [smem:[#allocation2 + $0x5]]
        %v262 = vstv %s261
        %v263 = vmul.f32 %v260, %v262
        %v264 = vadd.f32 %v259, %v263
        %v265 = vld [vmem:[%s239] sm:$0x3]
        %s266 = sld [smem:[#allocation2 + $0x9]]
        %v267 = vstv %s266
        %v268 = vmul.f32 %v265, %v267
        %v269 = vadd.f32 %v264, %v268
        %v270 = vld [vmem:[%s245] sm:$0x3]
        %s271 = sld [smem:[#allocation2 + $0xd]]
        %v272 = vstv %s271
        %v273 = vmul.f32 %v270, %v272
        %v274 = vadd.f32 %v269, %v273
        %s275 = sadd.s32 %s251, 1
        %s276 = sld [smem:[#allocation4 + %s275]]
        %v277 = vstv %s276
        %v278 = vadd.f32 %v274, %v277
        %s279 = scalar_lea.vmem %s228, 2
        %280 = vst [vmem:[%s279] sm:$0x3] %v278
        %v281 = vld [vmem:[%s220] sm:$0x3]
        %s282 = sld [smem:[#allocation2 + $0x2]]
        %v283 = vstv %s282
        %v284 = vmul.f32 %v281, %v283
        %v285 = vld [vmem:[%s233] sm:$0x3]
        %s286 = sld [smem:[#allocation2 + $0x6]]
        %v287 = vstv %s286
        %v288 = vmul.f32 %v285, %v287
        %v289 = vadd.f32 %v284, %v288
        %v290 = vld [vmem:[%s239] sm:$0x3]
        %s291 = sld [smem:[#allocation2 + $0xa]]
        %v292 = vstv %s291
        %v293 = vmul.f32 %v290, %v292
        %v294 = vadd.f32 %v289, %v293
        %v295 = vld [vmem:[%s245] sm:$0x3]
        %s296 = sld [smem:[#allocation2 + $0xe]]
        %v297 = vstv %s296
        %v298 = vmul.f32 %v295, %v297
        %v299 = vadd.f32 %v294, %v298
        %s300 = sadd.s32 %s251, 2
        %s301 = sld [smem:[#allocation4 + %s300]]
        %v302 = vstv %s301
        %v303 = vadd.f32 %v299, %v302
        %s304 = scalar_lea.vmem %s228, 4
        %305 = vst [vmem:[%s304] sm:$0x3] %v303
        %v306 = vld [vmem:[%s220] sm:$0x3]
        %s307 = sld [smem:[#allocation2 + $0x3]]
        %v308 = vstv %s307
        %v309 = vmul.f32 %v306, %v308
        %v310 = vld [vmem:[%s233] sm:$0x3]
        %s311 = sld [smem:[#allocation2 + $0x7]]
        %v312 = vstv %s311
        %v313 = vmul.f32 %v310, %v312
        %v314 = vadd.f32 %v309, %v313
        %v315 = vld [vmem:[%s239] sm:$0x3]
        %s316 = sld [smem:[#allocation2 + $0xb]]
        %v317 = vstv %s316
        %v318 = vmul.f32 %v315, %v317
        %v319 = vadd.f32 %v314, %v318
        %v320 = vld [vmem:[%s245] sm:$0x3]
        %s321 = sld [smem:[#allocation2 + $0xf]]
        %v322 = vstv %s321
        %v323 = vmul.f32 %v320, %v322
        %v324 = vadd.f32 %v319, %v323
        %s325 = sadd.s32 %s251, 3
        %s326 = sld [smem:[#allocation4 + %s325]]
        %v327 = vstv %s326
        %v328 = vadd.f32 %v324, %v327
        %s329 = scalar_lea.vmem %s228, 6
        %330 = vst [vmem:[%s329] sm:$0x3] %v328
        %p331 = scmp.lt.s32.totalorder %s20, 1
        %s332 = scalar_select %p331, %s20, 1
        %p333 = scmp.lt.s32.totalorder %s21, 0
        %s334 = scalar_select %p333, %s21, 0
        %s335 = smul.addr %s332, 4
        %s336 = sadd.s32 %s334, %s335
        %s337 = smul.addr %s336, 2
        %s338 = scalar_lea.vmem %s3, %s337
        // Predicated region
        $region41: #{unet_ensemble_forward.1} parent=31 // pred_check
          %p339 = pneg %p118
        $region42: #{unet_ensemble_forward.1} parent=31 // pred_check_branch
          %341 = sbr.rel (%p339) target = $region44
        $region43: #{unet_ensemble_forward.1} parent=31 // pred_region
          _
        $region44: #{unet_ensemble_forward.1} parent=31 // pred_fallthru
          _
      $region32: #{unet_ensemble_forward.1} parent=5 // pred_fallthru
        _
      %p342 = scmp.le.s32.totalorder 2, %s11
      // Predicated region
      $region45: #{unet_ensemble_forward.1} parent=5 // pred_check
        %p343 = pneg %p342
      $region46: #{unet_ensemble_forward.1} parent=5 // pred_check_branch
        %345 = sbr.rel (%p343) target = $region48
      $region47: #{unet_ensemble_forward.1} parent=5 // pred_region
        %s346 = ssub.s32 %s11, 2
        // Predicated region
        $region49: #{unet_ensemble_forward.1} parent=47 // pred_check
          %p347 = pneg %p124
        $region50: #{unet_ensemble_forward.1} parent=47 // pred_check_branch
          %349 = sbr.rel (%p347) target = $region52
        $region51: #{unet_ensemble_forward.1} parent=47 // pred_region
          %p350 = scmp.lt.s32.totalorder %s22, 1
          %s351 = scalar_select %p350, %s22, 1
          %p352 = scmp.lt.s32.totalorder %s23, 0
          %s353 = scalar_select %p352, %s23, 0
          %s354 = smul.addr %s351, 4
          %s355 = sadd.s32 %s353, %s354
          %s356 = smul.addr %s355, 2
          %s357 = scalar_lea.vmem %s3, %s356
        $region52: #{unet_ensemble_forward.1} parent=47 // pred_fallthru
          _
      $region48: #{unet_ensemble_forward.1} parent=5 // pred_fallthru
        _
    $region6: #{unet_ensemble_forward.1} parent=1 // loop_footer
      %s15 = sadd.s32 1, %s11
    $region7: #{unet_ensemble_forward.1} parent=1 // loop_footer_branch
      %10 = sbr.rel target = $region3
    $region8: #{unet_ensemble_forward.1} parent=1 // loop_exit
      _
    %358 = vsyncpa [#allocation3], 1
    %s359 = scalar_lea.sflag [#allocation3], 1
    %360 = vsyncpa %s359, 1
    %361 = vsyncpa [#allocation5], 1

</llo_original>
